<compile_context>
chip_gen: v7x
topology: tpu7x:2x2x1
jax: 0.10.0
libtpu: 0.0.40
codegen_flags: <defaults>
</compile_context>

<pallas_src>
import math
import jax
import jax.numpy as jnp
from jax.experimental import pallas as pl
from jax.experimental.pallas import tpu as pltpu


def _round_up(x, m):
    return ((x + m - 1) // m) * m


# ------------------------- Pallas tiled GEMM (+ bias) -------------------------
#
# out^T (Cout_p, M_p) = W (Cout_p, K_p) @ A^T (K_p, M_p) + bias
# grid = (Cout tiles [parallel], M tiles [parallel], K tiles [arbitrary]).
# The f32 VMEM accumulator is initialized with the broadcast bias at k == 0 so
# the finalize step is a plain store.

def _gemm_bias_kernel(w_ref, a_ref, b_ref, o_ref, acc_ref):
    k = pl.program_id(2)

    @pl.when(k == 0)
    def _init():
        acc_ref[...] = jnp.broadcast_to(b_ref[...], acc_ref.shape)

    acc_ref[...] += jnp.dot(w_ref[...], a_ref[...],
                            preferred_element_type=jnp.float32)

    @pl.when(k == pl.num_programs(2) - 1)
    def _finalize():
        o_ref[...] = acc_ref[...].astype(o_ref.dtype)


def gemm_bias_T(w_mat, a_t, bias):
    """w_mat (Cout,K) bf16, a_t (K,M) bf16, bias (Cout,) f32 -> (Cout,M) f32."""
    Cout, K = w_mat.shape
    K2, M = a_t.shape
    assert K == K2

    # --- tile selection ---------------------------------------------------
    # K aligned to 128 (MXU native contraction width); a single resident K
    # block when it fits (W tile then has a constant block index across M and
    # is not re-DMAed), otherwise 512-wide streamed K tiles.
    Kr = _round_up(K, 128)
    if Kr <= 2048:
        TK, Kp = Kr, Kr
    else:
        TK = 512
        Kp = _round_up(K, TK)

    # Cout blocked at <= 256 result rows (matches MXU result-tile height); bf16
    # W rows padded to a multiple of 16 for sublane packing.
    Cr = _round_up(Cout, 16)
    TC = Cr if Cr <= 256 else 256
    Cp = _round_up(max(Cout, TC), TC)

    # Lane-dense M tiles: large tiles to amortize per-grid-step overhead, but
    # keep >= 2 M tiles when M is large (v7x megacore shards the parallel M
    # axis) and respect a conservative VMEM budget (v7x: 64 MiB physical).
    Mr = _round_up(M, 128)
    if Mr <= 512:
        TM = Mr
    else:
        TM = 2048
        while TM > 256 and Mr < 2 * TM:
            TM //= 2

    def _vmem_footprint(tm):
        return (2 * TC * TK * 2      # double-buffered W tiles (bf16)
                + 2 * TK * tm * 2    # double-buffered A^T tiles (bf16)
                + 2 * TC * tm * 4    # double-buffered output tiles (f32)
                + TC * tm * 4)       # f32 accumulator

    while TM > 128 and _vmem_footprint(TM) > 24 * 1024 * 1024:
        TM //= 2
    Mp = _round_up(M, TM)

    # Pad only to the tile multiples (zeros do not change the result).
    w_p = jnp.pad(w_mat, ((0, Cp - Cout), (0, Kp - K)))
    a_p = jnp.pad(a_t, ((0, Kp - K), (0, Mp - M)))
    b_p = jnp.pad(bias.astype(jnp.float32).reshape(Cout, 1),
                  ((0, Cp - Cout), (0, 0)))

    grid = (Cp // TC, Mp // TM, Kp // TK)

    out = pl.pallas_call(
        _gemm_bias_kernel,
        out_shape=jax.ShapeDtypeStruct((Cp, Mp), jnp.float32),
        grid_spec=pltpu.PrefetchScalarGridSpec(
            num_scalar_prefetch=0,
            grid=grid,
            in_specs=[
                pl.BlockSpec((TC, TK), lambda c, m, k: (c, k)),   # W tile
                pl.BlockSpec((TK, TM), lambda c, m, k: (k, m)),   # A^T tile
                pl.BlockSpec((TC, 1), lambda c, m, k: (c, 0)),    # bias column
            ],
            out_specs=pl.BlockSpec((TC, TM), lambda c, m, k: (c, m)),
            scratch_shapes=[pltpu.VMEM((TC, TM), jnp.float32)],
        ),
        compiler_params=pltpu.CompilerParams(
            dimension_semantics=("parallel", "parallel", "arbitrary"),
            vmem_limit_bytes=32 * 1024 * 1024,
        ),
        cost_estimate=pl.CostEstimate(
            flops=2 * Cp * Kp * Mp,
            transcendentals=0,
            bytes_accessed=int(Cp * Kp * 2 + Kp * Mp * 2 + Cp * Mp * 4 + Cp * 4),
        ),
    )(w_p, a_p, b_p)
    return out[:Cout, :M]


# ----------------------- fractional-stride conv forward ----------------------

def _interp_matrix(Kk, O, dim, dil, pad, s_axis):
    """Separable bilinear sampling matrix R[k, o, dim]; zero outside input."""
    pos = (jnp.arange(Kk, dtype=jnp.float32)[:, None] * dil
           + jnp.arange(O, dtype=jnp.float32)[None, :] * s_axis - pad)  # (Kk,O)
    p0 = jnp.floor(pos)
    frac = pos - p0
    p0i = p0.astype(jnp.int32)
    grid_idx = jnp.arange(dim, dtype=jnp.int32)[None, None, :]
    m0 = (p0i[..., None] == grid_idx).astype(jnp.float32)          # OOB -> 0
    m1 = ((p0i + 1)[..., None] == grid_idx).astype(jnp.float32)
    return m0 * (1.0 - frac)[..., None] + m1 * frac[..., None]      # (Kk,O,dim)


def stride_conv2d_forward(x, weight, stride, int_stride, bias,
                          padding=(0, 0), dilation=(1, 1), groups=1):
    assert groups == 1  # TODO(synk): grouped conv not implemented in this synthetic kernel
    x = x.astype(jnp.float32)
    B, Cin, H, W = x.shape
    Cout, _, KH, KW = weight.shape
    pad_h, pad_w = padding
    dil_h, dil_w = dilation

    # Output size from the *static* integer stride (floor of the stride param,
    # clamped >= 1) — no per-call device->host sync.
    # TODO(synk): a traced learnable stride can only influence the fractional
    # sampling weights below, never OH/OW (shapes are static in JAX).
    int_sh = max(int(int_stride[0]), 1)
    int_sw = max(int(int_stride[1]), 1)
    OH = (H + 2 * pad_h - (dil_h * (KH - 1) + 1)) // int_sh + 1
    OW = (W + 2 * pad_w - (dil_w * (KW - 1) + 1)) // int_sw + 1
    if OH <= 0 or OW <= 0:
        raise ValueError("convolution input is too small")

    # fractional stride, clamped >= 1 (matches the forward's no_grad block)
    s = jnp.maximum(jnp.asarray(stride, jnp.float32), 1.0)

    Rh = _interp_matrix(KH, OH, H, dil_h, pad_h, s[0])   # (KH, OH, H)
    Rw = _interp_matrix(KW, OW, W, dil_w, pad_w, s[1])   # (KW, OW, W)

    # im2col via two small bf16 MXU contractions (no gathers / masks), landing
    # directly in bf16 GEMM-ready (K, M) = (Cin*KH*KW, B*OH*OW) layout: the big
    # K x M matrix is never materialized in f32.
    x_b = x.astype(jnp.bfloat16)
    rh_b = Rh.astype(jnp.bfloat16)
    rw_b = Rw.astype(jnp.bfloat16)
    T = jnp.einsum('aoh,bchw->aobcw', rh_b, x_b)             # contract H (bf16)
    A6 = jnp.einsum('dpw,aobcw->cadbop', rw_b, T)            # contract W (bf16)
    a_t = A6.reshape(Cin * KH * KW, B * OH * OW)
    w_mat = weight.reshape(Cout, Cin * KH * KW).astype(jnp.bfloat16)

    out_t = gemm_bias_T(w_mat, a_t, bias)                # Pallas hot path
    # (Cout, B*OH*OW) -> NCHW with a cheap leading-axis swap (minor dim kept).
    out = out_t.reshape(Cout, B, OH, OW).transpose(1, 0, 2, 3)
    return out


# ------------------------------- module wrapper -------------------------------

class StrideConv2d:
    def __init__(self, in_channels, out_channels, kernel_size,
                 padding=0, dilation=1, groups=1, bias=True, *, key):
        ks = (kernel_size, kernel_size) if isinstance(kernel_size, int) else tuple(kernel_size)
        self.in_channels = in_channels
        self.out_channels = out_channels
        self.kernel_size = ks
        self.padding = (padding, padding) if isinstance(padding, int) else tuple(padding)
        self.dilation = (dilation, dilation) if isinstance(dilation, int) else tuple(dilation)
        self.groups = groups
        self.use_bias = bias

        n = in_channels * ks[0] * ks[1]
        stdv = 1.0 / math.sqrt(n)
        k1, k2 = jax.random.split(key)
        self.weight = jax.random.uniform(
            k1, (out_channels, in_channels // groups, ks[0], ks[1]),
            minval=-stdv, maxval=stdv, dtype=jnp.float32)
        self.stride = jnp.ones((2,), jnp.float32) + 1.0   # learnable stride, init 2.0
        # Static integer-stride snapshot (floor of init value, clamped >= 1),
        # used only for output-shape computation.
        self.int_stride = (max(int(math.floor(2.0)), 1), max(int(math.floor(2.0)), 1))
        if bias:
            fan_in = (in_channels // groups) * ks[0] * ks[1]
            bound = 1.0 / math.sqrt(fan_in)
            self.bias = jax.random.uniform(k2, (out_channels,),
                                           minval=-bound, maxval=bound, dtype=jnp.float32)
        else:
            self.bias = jnp.zeros((out_channels,), jnp.float32)

    def __call__(self, x):
        KH, KW = self.kernel_size
        pad_h = max(KH - x.shape[2], 0)
        pad_w = max(KW - x.shape[3], 0)
        input_pad = pad_h > 0 or pad_w > 0
        if input_pad:
            x = jnp.pad(x, ((0, 0), (0, 0), (0, pad_h), (0, pad_w)))
        out = stride_conv2d_forward(x, self.weight, self.stride, self.int_stride,
                                    self.bias, self.padding, self.dilation, self.groups)
        if input_pad:
            out = out[:, :, :out.shape[2] - pad_h, :out.shape[3] - pad_w]
        return out


# ------------------------------------ main ------------------------------------

if __name__ == "__main__":
    key = jax.random.PRNGKey(0)
    kx, kp = jax.random.split(key)
    x = jax.random.normal(kx, (2, 4, 16, 16), dtype=jnp.float32)

    module = StrideConv2d(in_channels=4, out_channels=8, kernel_size=3,
                          padding=1, dilation=1, groups=1, bias=True, key=kp)
    out = module(x)
    jax.block_until_ready(out)

    # sanity: default stride parameter is exactly 2.0 -> must equal a standard
    # stride-2 conv.  Operands are rounded through bf16 to match the kernel's
    # MXU input dtype (accumulation is f32 in both paths; the 0/1 interpolation
    # matrices for an integer stride make the bf16 im2col exact).
    xq = x.astype(jnp.bfloat16).astype(jnp.float32)
    wq = module.weight.astype(jnp.bfloat16).astype(jnp.float32)
    ref = jax.lax.conv_general_dilated(
        xq, wq, window_strides=(2, 2), padding=[(1, 1), (1, 1)],
        dimension_numbers=("NCHW", "OIHW", "NCHW"),
        precision=jax.lax.Precision.HIGHEST)
    ref = ref + module.bias[None, :, None, None]

    assert out.shape == (2, 8, 8, 8), out.shape
    err = float(jnp.max(jnp.abs(out - ref)))
    assert err < 5e-3, f"mismatch vs reference: max abs err = {err}"

    print("KERNEL_OK")
</pallas_src>

<mosaic_0001>
module attributes {stable_mosaic.version = 11 : i64} {
  func.func @_gemm_bias_kernel(%arg0: i32, %arg1: i32, %arg2: i32, %arg3: memref<16x128xbf16, #tpu.memory_space<vmem>>, %arg4: memref<128x128xbf16, #tpu.memory_space<vmem>>, %arg5: memref<16x1xf32, #tpu.memory_space<vmem>>, %arg6: memref<16x128xf32, #tpu.memory_space<vmem>>, %arg7: memref<16x128xf32, #tpu.memory_space<vmem>>) attributes {dimension_semantics = [#tpu.dimension_semantics<parallel>, #tpu.dimension_semantics<parallel>, #tpu.dimension_semantics<arbitrary>], iteration_bounds = array<i64: 1, 1, 1>, scalar_prefetch = 0 : i64, scratch_operands = 1 : i64, tpu.core_type = #tpu.core_type<tc>, window_params = [{transform_indices = @transform_0, window_bounds = array<i64: 16, 128>}, {transform_indices = @transform_1, window_bounds = array<i64: 128, 128>}, {transform_indices = @transform_2, window_bounds = array<i64: 16, 1>}, {transform_indices = @transform_3, window_bounds = array<i64: 16, 128>}]} {
    %c0_i32 = arith.constant 0 : i32
    %0 = arith.cmpi eq, %arg2, %c0_i32 : i32
    %1 = arith.extui %0 : i1 to i32
    %c0_i32_0 = arith.constant 0 : i32
    %2 = arith.cmpi ne, %1, %c0_i32_0 : i32
    scf.if %2 {
      %c0_10 = arith.constant 0 : index
      %c0_11 = arith.constant 0 : index
      %12 = vector.load %arg5[%c0_10, %c0_11] : memref<16x1xf32, #tpu.memory_space<vmem>>, vector<16x1xf32>
      %13 = vector.shape_cast %12 : vector<16x1xf32> to vector<16x1xf32>
      %14 = vector.broadcast %13 : vector<16x1xf32> to vector<16x128xf32>
      %c0_12 = arith.constant 0 : index
      %c0_13 = arith.constant 0 : index
      %15 = vector.load %arg7[%c0_12, %c0_13] : memref<16x128xf32, #tpu.memory_space<vmem>>, vector<16x128xf32>
      tpu.vector_store %arg7[%c0_12, %c0_13], %14 {strides = array<i32>} : memref<16x128xf32, #tpu.memory_space<vmem>>, vector<16x128xf32>,
    } else {
    }
    %c0 = arith.constant 0 : index
    %c0_1 = arith.constant 0 : index
    %3 = vector.load %arg7[%c0, %c0_1] : memref<16x128xf32, #tpu.memory_space<vmem>>, vector<16x128xf32>
    %c0_2 = arith.constant 0 : index
    %c0_3 = arith.constant 0 : index
    %4 = vector.load %arg3[%c0_2, %c0_3] : memref<16x128xbf16, #tpu.memory_space<vmem>>, vector<16x128xbf16>
    %c0_4 = arith.constant 0 : index
    %c0_5 = arith.constant 0 : index
    %5 = vector.load %arg4[%c0_4, %c0_5] : memref<128x128xbf16, #tpu.memory_space<vmem>>, vector<128x128xbf16>
    %cst = arith.constant dense<0.000000e+00> : vector<16x128xf32>
    %6 = tpu.matmul %4, %5, %cst {dimension_numbers = #tpu.dot_dimension_numbers<[1], [0], [0], [1], [0, 0, 1, 1], [], []>} : vector<16x128xbf16>, vector<128x128xbf16>, vector<16x128xf32> -> vector<16x128xf32>
    %7 = arith.addf %3, %6 : vector<16x128xf32>
    %c0_6 = arith.constant 0 : index
    %c0_7 = arith.constant 0 : index
    %8 = vector.load %arg7[%c0_6, %c0_7] : memref<16x128xf32, #tpu.memory_space<vmem>>, vector<16x128xf32>
    tpu.vector_store %arg7[%c0_6, %c0_7], %7 {strides = array<i32>} : memref<16x128xf32, #tpu.memory_space<vmem>>, vector<16x128xf32>,
    %c0_i32_8 = arith.constant 0 : i32
    %9 = arith.cmpi eq, %arg2, %c0_i32_8 : i32
    %10 = arith.extui %9 : i1 to i32
    %c0_i32_9 = arith.constant 0 : i32
    %11 = arith.cmpi ne, %10, %c0_i32_9 : i32
    scf.if %11 {
      %c0_10 = arith.constant 0 : index
      %c0_11 = arith.constant 0 : index
      %12 = vector.load %arg7[%c0_10, %c0_11] : memref<16x128xf32, #tpu.memory_space<vmem>>, vector<16x128xf32>
      %c0_12 = arith.constant 0 : index
      %c0_13 = arith.constant 0 : index
      %13 = vector.load %arg6[%c0_12, %c0_13] : memref<16x128xf32, #tpu.memory_space<vmem>>, vector<16x128xf32>
      tpu.vector_store %arg6[%c0_12, %c0_13], %12 {strides = array<i32>} : memref<16x128xf32, #tpu.memory_space<vmem>>, vector<16x128xf32>,
    } else {
    }
    return
  }
  func.func @transform_0(%arg0: i32, %arg1: i32, %arg2: i32) -> (i32, i32) {
    %c0_i32 = arith.constant 0 : i32
    return %arg0, %arg2 : i32, i32
  }
  func.func @transform_1(%arg0: i32, %arg1: i32, %arg2: i32) -> (i32, i32) {
    %c0_i32 = arith.constant 0 : i32
    return %arg2, %arg1 : i32, i32
  }
  func.func @transform_2(%arg0: i32, %arg1: i32, %arg2: i32) -> (i32, i32) {
    %c0_i32 = arith.constant 0 : i32
    %c0_i32_0 = arith.constant 0 : i32
    return %arg0, %c0_i32 : i32, i32
  }
  func.func @transform_3(%arg0: i32, %arg1: i32, %arg2: i32) -> (i32, i32) {
    %c0_i32 = arith.constant 0 : i32
    return %arg0, %arg1 : i32, i32
  }
}

</mosaic_0001>

<llo_original>
// kernel: tpu_custom_call.1
$region0: #{tpu_custom_call.1}
  #allocation0 [shape = 'u32[]', space=smem, size = 0x4, offset = 0x4, fixed_abs, tag = 'smem constant byte address 0x4 - core index']
  #allocation1 [shape = 'u32[144,128]{1,0:T(1,128)}', space=vmem, size = 0x12000, scoped, tag = 'internal scratch']
  #allocation2 [shape = 'f32[16,128]{1,0:T(8,128)}', space=vmem, size = 0x2000, scoped, tag = 'scratch operand']
  %s0 = inlined_call_operand.vmem [shape: bf16[16,128], index: 0, kind: input, shape index: {}]
  %s1 = inlined_call_operand.hbm [shape: bf16[128,128], index: 1, kind: input, shape index: {}]
  %s2 = inlined_call_operand.vmem [shape: f32[16,1], index: 2, kind: input, shape index: {}]
  %s3 = inlined_call_operand.hbm [shape: f32[16,128], index: 3, kind: output, shape index: {}]
  %s4 = sld [smem:[#allocation0]]
  $region34: #{tpu_custom_call.1} parent=0
    _
  %s6 = ssub.s32 1, %s4
  %s7 = scalar_select 0, %s6, %s4
  $region1: #{tpu_custom_call.1} parent=0
    #allocation3 [shape = 'u8[32768]{0}', space=vmem, size = 0x8000, scoped, tag = 'input window, operand 1, single buffered']
    #allocation4 [shape = 's32[1]{0}', space=sflag, size = 0x4, scoped, tag = 'scoped memory for tpu_custom_call.1']
    #allocation5 [shape = 's32[1]{0}', space=sflag, size = 0x4, scoped, tag = 'scoped memory for tpu_custom_call.1']
    #allocation6 [shape = 'u8[8192]{0}', space=vmem, size = 0x2000, scoped, tag = 'output window, operand 0, single buffered']
    %8 = vsyncpa [#allocation4], 0
    %9 = vsyncpa [#allocation5], 0
    // Predicated region
    $region2: #{tpu_custom_call.1} parent=1 // pred_check
      _
    $region3: #{tpu_custom_call.1} parent=1 // pred_check_branch
      %11 = sbr.rel (0) target = $region5
    $region4: #{tpu_custom_call.1} parent=1 // pred_region
      _
    $region5: #{tpu_custom_call.1} parent=1 // pred_fallthru
      _
    // Predicated region
    $region6: #{tpu_custom_call.1} parent=1 // pred_check
      _
    $region7: #{tpu_custom_call.1} parent=1 // pred_check_branch
      %13 = sbr.rel (0) target = $region9
    $region8: #{tpu_custom_call.1} parent=1 // pred_region
      %s15 = ssub.s32 1024, 1024
      %16 = vsyncadd [#allocation4], %s15
      %s17 = sshll.u32 [#allocation3], 4
      %s18 = int_to_ptr.vmem [resolvable:$true] %s17
      %23 = dma.hbm_to_vmem [thread:$0]  %s1, 1024, %s18, [#allocation4], 64, 64, 4
    $region9: #{tpu_custom_call.1} parent=1 // pred_fallthru
      _
    // Predicated region
    $region10: #{tpu_custom_call.1} parent=1 // pred_check
      _
    $region11: #{tpu_custom_call.1} parent=1 // pred_check_branch
      %25 = sbr.rel (0) target = $region13
    $region12: #{tpu_custom_call.1} parent=1 // pred_region
      _
    $region13: #{tpu_custom_call.1} parent=1 // pred_fallthru
      _
    // Predicated region
    $region14: #{tpu_custom_call.1} parent=1 // pred_check
      _
    $region15: #{tpu_custom_call.1} parent=1 // pred_check_branch
      %27 = sbr.rel (0) target = $region17
    $region16: #{tpu_custom_call.1} parent=1 // pred_region
      %28 = dma.done [#allocation4], 1024
    $region17: #{tpu_custom_call.1} parent=1 // pred_fallthru
      _
    %p30 = scmp.eq.s32.totalorder 0, 0
    // Predicated region
    $region18: #{tpu_custom_call.1} parent=1 // pred_check
      %p31 = pneg %p30
    $region19: #{tpu_custom_call.1} parent=1 // pred_check_branch
      %33 = sbr.rel (%p31) target = $region21
    $region20: #{tpu_custom_call.1} parent=1 // pred_region
      %v34 = vld [vmem:[%s2] sm:$0xff]
      %v35 = vld [vmem:[%s2 + $0x8] sm:$0xff]
      %37 = vset.pattern.permute.xlu0 0
      %38 = vperm.xlu0 %37, %v34
      %v39 = vpop.permute.xlu0 %38
      %42 = vset.pattern.permute.xlu0 0
      %43 = vperm.xlu0 %42, %v35
      %v44 = vpop.permute.xlu0 %43
      %46 = vst [vmem:[#allocation2] sm:$0xff] %v39
      %47 = vst [vmem:[#allocation2 + $0x8] sm:$0xff] %v44
    $region21: #{tpu_custom_call.1} parent=1 // pred_fallthru
      _
    %v48 = vld [vmem:[#allocation2] sm:$0xff]
    %v49 = vld [vmem:[#allocation2 + $0x8] sm:$0xff]
    %v50 = vld [vmem:[%s0] sm:$0xf]
    %v51 = vld [vmem:[%s0 + $0x4] sm:$0xf]
    %v52 = vld [vmem:[#allocation3] sm:$0xf]
    %v53 = vld [vmem:[#allocation3 + $0x4] sm:$0xf]
    %v54 = vld [vmem:[#allocation3 + $0x8] sm:$0xf]
    %v55 = vld [vmem:[#allocation3 + $0xc] sm:$0xf]
    %v56 = vld [vmem:[#allocation3 + $0x10] sm:$0xf]
    %v57 = vld [vmem:[#allocation3 + $0x14] sm:$0xf]
    %v58 = vld [vmem:[#allocation3 + $0x18] sm:$0xf]
    %v59 = vld [vmem:[#allocation3 + $0x1c] sm:$0xf]
    %v60 = vld [vmem:[#allocation3 + $0x20] sm:$0xf]
    %v61 = vld [vmem:[#allocation3 + $0x24] sm:$0xf]
    %v62 = vld [vmem:[#allocation3 + $0x28] sm:$0xf]
    %v63 = vld [vmem:[#allocation3 + $0x2c] sm:$0xf]
    %v64 = vld [vmem:[#allocation3 + $0x30] sm:$0xf]
    %v65 = vld [vmem:[#allocation3 + $0x34] sm:$0xf]
    %v66 = vld [vmem:[#allocation3 + $0x38] sm:$0xf]
    %v67 = vld [vmem:[#allocation3 + $0x3c] sm:$0xf]
    %v70 = vunpack.c.l.b16 %v50
    %v71 = vunpack.c.l.b16 %v51
    %v72 = vpack.c.b16 %v71, %v70
    %v90 = vunpack.c.l.b16 %v52
    %v91 = vunpack.c.l.b16 %v53
    %v92 = vunpack.c.l.b16 %v54
    %v93 = vunpack.c.l.b16 %v55
    %v94 = vunpack.c.l.b16 %v56
    %v95 = vunpack.c.l.b16 %v57
    %v96 = vunpack.c.l.b16 %v58
    %v97 = vunpack.c.l.b16 %v59
    %v98 = vunpack.c.l.b16 %v60
    %v99 = vunpack.c.l.b16 %v61
    %v100 = vunpack.c.l.b16 %v62
    %v101 = vunpack.c.l.b16 %v63
    %v102 = vunpack.c.l.b16 %v64
    %v103 = vunpack.c.l.b16 %v65
    %v104 = vunpack.c.l.b16 %v66
    %v105 = vunpack.c.l.b16 %v67
    %v106 = vpack.c.b16 %v91, %v90
    %v107 = vpack.c.b16 %v93, %v92
    %v108 = vpack.c.b16 %v95, %v94
    %v109 = vpack.c.b16 %v97, %v96
    %v110 = vpack.c.b16 %v99, %v98
    %v111 = vpack.c.b16 %v101, %v100
    %v112 = vpack.c.b16 %v103, %v102
    %v113 = vpack.c.b16 %v105, %v104
    %122 = vmatprep.subr.bf16.mxu0 0
    %123 = vmatpush1.bf16.msra.mxu0 %v106
    %124 = vmatprep.subr.bf16.mxu0 0
    %125 = vmatpush1.bf16.msra.mxu0 %v107
    %126 = vmatprep.subr.bf16.mxu0 0
    %127 = vmatpush1.bf16.msra.mxu0 %v108
    %128 = vmatprep.subr.bf16.mxu0 0
    %129 = vmatpush1.bf16.msra.mxu0 %v109
    %130 = vmatprep.subr.bf16.mxu0 0
    %131 = vmatpush1.bf16.msra.mxu0 %v110
    %132 = vmatprep.subr.bf16.mxu0 0
    %133 = vmatpush1.bf16.msra.mxu0 %v111
    %134 = vmatprep.subr.bf16.mxu0 0
    %135 = vmatpush1.bf16.msra.mxu0 %v112
    %136 = vmatprep.subr.bf16.mxu0 0
    %137 = vmatpush1.bf16.msra.mxu0 %v113
    %138 = vmatprep.subr.bf16.mxu0 0
    %139 = vmatpush1.bf16.msra.mxu0 0
    %140 = vmatprep.subr.bf16.mxu0 0
    %141 = vmatpush1.bf16.msra.mxu0 0
    %142 = vmatprep.subr.bf16.mxu0 0
    %143 = vmatpush1.bf16.msra.mxu0 0
    %144 = vmatprep.subr.bf16.mxu0 0
    %145 = vmatpush1.bf16.msra.mxu0 0
    %146 = vmatprep.subr.bf16.mxu0 0
    %147 = vmatpush1.bf16.msra.mxu0 0
    %148 = vmatprep.subr.bf16.mxu0 0
    %149 = vmatpush1.bf16.msra.mxu0 0
    %150 = vmatprep.subr.bf16.mxu0 0
    %151 = vmatpush1.bf16.msra.mxu0 0
    %152 = vmatprep.subr.bf16.mxu0 0
    %153 = vmatpush1.bf16.msra.mxu0 0
    %154 = vmatprep.mubr.bf16.mxu0 0
    %155 = vmatmul.mubr.bf16.gmra.mrb[0].mxu0 %v72
    %v156 = vpop.f32.mrb[0].mxu0
    %v157 = vadd.f32 0.0, %v156
    %v158 = vpop.f32.mrb[0].mxu0
    %v159 = vpop.f32.mrb[0].mxu0
    %v160 = vadd.f32 0.0, %v159
    %v161 = vpop.f32.mrb[0].mxu0
    %162 = vdwg.mxu0
    %v163 = vadd.f32 %v48, %v157
    %v164 = vadd.f32 %v49, %v160
    %165 = vst [vmem:[#allocation2] sm:$0xff] %v163
    %166 = vst [vmem:[#allocation2 + $0x8] sm:$0xff] %v164
    // Predicated region
    $region22: #{tpu_custom_call.1} parent=1 // pred_check
      %p167 = pneg %p30
    $region23: #{tpu_custom_call.1} parent=1 // pred_check_branch
      %169 = sbr.rel (%p167) target = $region25
    $region24: #{tpu_custom_call.1} parent=1 // pred_region
      %v170 = vld [vmem:[#allocation2] sm:$0xff]
      %v171 = vld [vmem:[#allocation2 + $0x8] sm:$0xff]
      %172 = vst [vmem:[#allocation6] sm:$0xff] %v170
      %173 = vst [vmem:[#allocation6 + $0x8] sm:$0xff] %v171
    $region25: #{tpu_custom_call.1} parent=1 // pred_fallthru
      _
    // Predicated region
    $region26: #{tpu_custom_call.1} parent=1 // pred_check
      _
    $region27: #{tpu_custom_call.1} parent=1 // pred_check_branch
      %175 = sbr.rel (0) target = $region29
    $region28: #{tpu_custom_call.1} parent=1 // pred_region
      %s177 = ssub.s32 256, 256
      %178 = vsyncadd [#allocation5], %s177
      %s179 = sshll.u32 [#allocation6], 4
      %s180 = int_to_ptr.vmem [resolvable:$true] %s179
      %185 = dma.vmem_to_hbm [thread:$0]  %s180, 256, %s3, [#allocation5], 128, 128, 8
    $region29: #{tpu_custom_call.1} parent=1 // pred_fallthru
      _
    // Predicated region
    $region30: #{tpu_custom_call.1} parent=1 // pred_check
      _
    $region31: #{tpu_custom_call.1} parent=1 // pred_check_branch
      %187 = sbr.rel (0) target = $region33
    $region32: #{tpu_custom_call.1} parent=1 // pred_region
      %188 = dma.done [#allocation5], 256
    $region33: #{tpu_custom_call.1} parent=1 // pred_fallthru
      _
    %189 = vsyncpa [#allocation4], 1
    %190 = vsyncpa [#allocation5], 1

</llo_original>
